<compile_context>
chip_gen: v5e
topology: v5e:2x2
jax: 0.10.0
libtpu: 0.0.40
codegen_flags: <defaults>
</compile_context>

<pallas_src>
import functools

import jax
import jax.numpy as jnp
from jax.experimental import pallas as pl
from jax.experimental.pallas import tpu as pltpu

D_IN = 600
H1, H2, H3, D_OUT = 384, 128, 128, 128      # padded widths (true: 300, 100, 50, 5)
TRUE_OUT = 5
DEFAULT_BLOCK_B = 1024


def mlp_kernel(x_ref, w1_ref, b1_ref, w2_ref, b2_ref, w3_ref, b3_ref,
               w4_ref, b4_ref, o_ref):
    # One (TB, 600) batch tile. bf16 operands on the MXU, f32 accumulate/bias/ReLU.
    x = x_ref[...].astype(jnp.bfloat16)                                  # in-kernel cast
    h1 = jnp.dot(x, w1_ref[...], preferred_element_type=jnp.float32) + b1_ref[...]
    h1 = jnp.maximum(h1, 0.0).astype(jnp.bfloat16)                       # (TB, 384)
    h2 = jnp.dot(h1, w2_ref[...], preferred_element_type=jnp.float32) + b2_ref[...]
    h2 = jnp.maximum(h2, 0.0).astype(jnp.bfloat16)                       # (TB, 128)
    h3 = jnp.dot(h2, w3_ref[...], preferred_element_type=jnp.float32) + b3_ref[...]
    h3 = jnp.maximum(h3, 0.0).astype(jnp.bfloat16)                       # (TB, 128)
    h4 = jnp.dot(h3, w4_ref[...], preferred_element_type=jnp.float32) + b4_ref[...]
    o_ref[...] = h4.astype(o_ref.dtype)                                  # (TB, 128) bf16


def _round_up(n, m):
    return (n + m - 1) // m * m


def _pad_to(a, shape):
    return jnp.pad(a, [(0, s - d) for d, s in zip(a.shape, shape)])


def prepare_params(params):
    """One-time prep: PyTorch (out,in) weights -> (in,out), zero-pad to lane-dense
    widths, bf16 matmul operands; biases stay f32 (added onto the f32 accumulator)."""
    (w1, b1), (w2, b2), (w3, b3), (w4, b4) = params
    w1p = _pad_to(jnp.asarray(w1).T, (D_IN, H1)).astype(jnp.bfloat16)
    w2p = _pad_to(jnp.asarray(w2).T, (H1, H2)).astype(jnp.bfloat16)
    w3p = _pad_to(jnp.asarray(w3).T, (H2, H3)).astype(jnp.bfloat16)
    w4p = _pad_to(jnp.asarray(w4).T, (H3, D_OUT)).astype(jnp.bfloat16)
    b1p = _pad_to(jnp.asarray(b1).reshape(1, -1).astype(jnp.float32), (1, H1))
    b2p = _pad_to(jnp.asarray(b2).reshape(1, -1).astype(jnp.float32), (1, H2))
    b3p = _pad_to(jnp.asarray(b3).reshape(1, -1).astype(jnp.float32), (1, H3))
    b4p = _pad_to(jnp.asarray(b4).reshape(1, -1).astype(jnp.float32), (1, D_OUT))
    return (w1p, b1p, w2p, b2p, w3p, b3p, w4p, b4p)


@functools.partial(jax.jit, static_argnames=("block_b",))
def neural_net_forward(x, prepped, block_b=DEFAULT_BLOCK_B):
    """x: any shape reshapable to (-1, 600). prepped = prepare_params(params).
    Returns squeeze(logits) like the PyTorch module."""
    w1p, b1p, w2p, b2p, w3p, b3p, w4p, b4p = prepped
    x2d = x.reshape(-1, D_IN)                 # native dtype; no wrapper pad/cast pass
    B = x2d.shape[0]

    # Balanced batch tiling, no row padding; Pallas masks the ragged final block.
    n_tiles = pl.cdiv(B, block_b)
    if n_tiles == 1:
        tb = B                                # single tile == full batch dim
    else:
        if n_tiles % 2:                       # even step count keeps v7x's 2 TCs busy
            n_tiles += 1
        tb = _round_up(pl.cdiv(B, n_tiles), 8)
    grid = (pl.cdiv(B, tb),)

    # Weights/biases are VMEM-resident across batch tiles (constant index_map).
    resident = lambda shp: pl.BlockSpec(shp, lambda i: (0, 0))

    out = pl.pallas_call(
        mlp_kernel,
        out_shape=jax.ShapeDtypeStruct((B, D_OUT), jnp.bfloat16),
        grid=grid,
        in_specs=[
            pl.BlockSpec((tb, D_IN), lambda i: (i, 0)),
            resident((D_IN, H1)), resident((1, H1)),
            resident((H1, H2)),   resident((1, H2)),
            resident((H2, H3)),   resident((1, H3)),
            resident((H3, D_OUT)), resident((1, D_OUT)),
        ],
        out_specs=pl.BlockSpec((tb, D_OUT), lambda i: (i, 0)),
        compiler_params=pltpu.CompilerParams(
            dimension_semantics=("parallel",),
            vmem_limit_bytes=32 * 1024 * 1024,
        ),
    )(x2d, w1p, b1p, w2p, b2p, w3p, b3p, w4p, b4p)

    # Padded weight/bias columns are zero, so lanes [:5] are the exact logits.
    logits = out[:, :TRUE_OUT].astype(jnp.float32)
    # PyTorch's .squeeze() removes all size-1 dims (e.g. batch of 1 -> shape (5,)).
    return jnp.squeeze(logits)


def init_params(key):
    """Deterministic init mimicking nn.Linear default U(-1/sqrt(in), 1/sqrt(in))."""
    dims = [(600, 300), (300, 100), (100, 50), (50, 5)]
    params = []
    for fan_in, fan_out in dims:
        key, kw, kb = jax.random.split(key, 3)
        bound = 1.0 / jnp.sqrt(fan_in)
        w = jax.random.uniform(kw, (fan_out, fan_in), jnp.float32, -bound, bound)
        b = jax.random.uniform(kb, (fan_out,), jnp.float32, -bound, bound)
        params.append((w, b))
    return params


def reference_forward_f32(x, params):
    (w1, b1), (w2, b2), (w3, b3), (w4, b4) = params
    h = x.reshape(-1, D_IN)
    h = jnp.maximum(h @ w1.T + b1, 0.0)
    h = jnp.maximum(h @ w2.T + b2, 0.0)
    h = jnp.maximum(h @ w3.T + b3, 0.0)
    h = h @ w4.T + b4
    return jnp.squeeze(h)


def reference_forward_bf16(x, params):
    """Same bf16-operand / f32-accumulate recipe as the kernel, in plain jnp."""
    h = x.reshape(-1, D_IN).astype(jnp.bfloat16)
    for idx, (w, b) in enumerate(params):
        h = jnp.dot(h, w.T.astype(jnp.bfloat16),
                    preferred_element_type=jnp.float32) + b.astype(jnp.float32)
        if idx < 3:
            h = jnp.maximum(h, 0.0).astype(jnp.bfloat16)
    return jnp.squeeze(h)


if __name__ == "__main__":
    key = jax.random.PRNGKey(0)
    k_param, k_x1, k_x2, k_x3 = jax.random.split(key, 4)
    params = init_params(k_param)
    prepped = prepare_params(params)          # one-time weight prep

    # Small-batch latency path; non-2D input exercises view(-1, 600). Single tile.
    x_small = jax.random.normal(k_x1, (2, 4, D_IN), jnp.float32)   # -> 8 rows
    y_small = jax.block_until_ready(neural_net_forward(x_small, prepped))
    assert y_small.shape == (8, TRUE_OUT), y_small.shape
    assert jnp.allclose(y_small, reference_forward_bf16(x_small, params),
                        atol=2e-2, rtol=2e-2), "small-batch mismatch (bf16 ref)"
    assert jnp.allclose(y_small, reference_forward_f32(x_small, params),
                        atol=6e-2, rtol=6e-2), "small-batch mismatch (f32 ref)"

    # Multi-tile path with a ragged final tile: B=52, block_b=16 -> tb=16, grid=(4,),
    # last tile has only 4 valid rows (write-masked by Pallas).
    x_mid = jax.random.normal(k_x2, (52, D_IN), jnp.float32)
    y_mid = jax.block_until_ready(neural_net_forward(x_mid, prepped, block_b=16))
    assert y_mid.shape == (52, TRUE_OUT), y_mid.shape
    assert jnp.allclose(y_mid, reference_forward_bf16(x_mid, params),
                        atol=2e-2, rtol=2e-2), "multi-tile mismatch (bf16 ref)"
    assert jnp.allclose(y_mid, reference_forward_f32(x_mid, params),
                        atol=6e-2, rtol=6e-2), "multi-tile mismatch (f32 ref)"

    # Batch of 1: .squeeze() drops the batch dim, matching torch semantics.
    x_one = jax.random.normal(k_x3, (1, D_IN), jnp.float32)
    y_one = jax.block_until_ready(neural_net_forward(x_one, prepped))
    assert y_one.shape == (TRUE_OUT,), y_one.shape

    print("KERNEL_OK")
</pallas_src>

<mosaic_0001>
module attributes {stable_mosaic.version = 11 : i64} {
  func.func @mlp_kernel(%arg0: i32, %arg1: memref<8x600xf32, #tpu.memory_space<vmem>>, %arg2: memref<600x384xbf16, #tpu.memory_space<vmem>>, %arg3: memref<1x384xf32, #tpu.memory_space<vmem>>, %arg4: memref<384x128xbf16, #tpu.memory_space<vmem>>, %arg5: memref<1x128xf32, #tpu.memory_space<vmem>>, %arg6: memref<128x128xbf16, #tpu.memory_space<vmem>>, %arg7: memref<1x128xf32, #tpu.memory_space<vmem>>, %arg8: memref<128x128xbf16, #tpu.memory_space<vmem>>, %arg9: memref<1x128xf32, #tpu.memory_space<vmem>>, %arg10: memref<8x128xbf16, #tpu.memory_space<vmem>>) attributes {dimension_semantics = [#tpu.dimension_semantics<parallel>], iteration_bounds = array<i64: 1>, scalar_prefetch = 0 : i64, scratch_operands = 0 : i64, tpu.core_type = #tpu.core_type<tc>, window_params = [{transform_indices = @transform_0, window_bounds = array<i64: 8, 600>}, {pipeline_mode = #tpu.pipeline_mode<synchronous>, transform_indices = @transform_1, window_bounds = array<i64: 600, 384>}, {pipeline_mode = #tpu.pipeline_mode<synchronous>, transform_indices = @transform_2, window_bounds = array<i64: 1, 384>}, {pipeline_mode = #tpu.pipeline_mode<synchronous>, transform_indices = @transform_3, window_bounds = array<i64: 384, 128>}, {pipeline_mode = #tpu.pipeline_mode<synchronous>, transform_indices = @transform_4, window_bounds = array<i64: 1, 128>}, {pipeline_mode = #tpu.pipeline_mode<synchronous>, transform_indices = @transform_5, window_bounds = array<i64: 128, 128>}, {pipeline_mode = #tpu.pipeline_mode<synchronous>, transform_indices = @transform_6, window_bounds = array<i64: 1, 128>}, {pipeline_mode = #tpu.pipeline_mode<synchronous>, transform_indices = @transform_7, window_bounds = array<i64: 128, 128>}, {pipeline_mode = #tpu.pipeline_mode<synchronous>, transform_indices = @transform_8, window_bounds = array<i64: 1, 128>}, {transform_indices = @transform_9, window_bounds = array<i64: 8, 128>}]} {
    %c0 = arith.constant 0 : index
    %c0_0 = arith.constant 0 : index
    %0 = vector.load %arg1[%c0, %c0_0] : memref<8x600xf32, #tpu.memory_space<vmem>>, vector<8x600xf32>
    %1 = arith.truncf %0 : vector<8x600xf32> to vector<8x600xbf16>
    %c0_1 = arith.constant 0 : index
    %c0_2 = arith.constant 0 : index
    %2 = vector.load %arg2[%c0_1, %c0_2] : memref<600x384xbf16, #tpu.memory_space<vmem>>, vector<600x384xbf16>
    %cst = arith.constant dense<0.000000e+00> : vector<8x384xf32>
    %3 = tpu.matmul %1, %2, %cst {dimension_numbers = #tpu.dot_dimension_numbers<[1], [0], [0], [1], [0, 0, 1, 1], [], []>} : vector<8x600xbf16>, vector<600x384xbf16>, vector<8x384xf32> -> vector<8x384xf32>
    %c0_3 = arith.constant 0 : index
    %c0_4 = arith.constant 0 : index
    %4 = vector.load %arg3[%c0_3, %c0_4] : memref<1x384xf32, #tpu.memory_space<vmem>>, vector<1x384xf32>
    %5 = vector.broadcast %4 : vector<1x384xf32> to vector<8x384xf32>
    %6 = arith.addf %3, %5 : vector<8x384xf32>
    %cst_5 = arith.constant 0.000000e+00 : f32
    %7 = vector.broadcast %cst_5 : f32 to vector<8x384xf32>
    %8 = arith.maximumf %6, %7 : vector<8x384xf32>
    %9 = arith.truncf %8 : vector<8x384xf32> to vector<8x384xbf16>
    %c0_6 = arith.constant 0 : index
    %c0_7 = arith.constant 0 : index
    %10 = vector.load %arg4[%c0_6, %c0_7] : memref<384x128xbf16, #tpu.memory_space<vmem>>, vector<384x128xbf16>
    %cst_8 = arith.constant dense<0.000000e+00> : vector<8x128xf32>
    %11 = tpu.matmul %9, %10, %cst_8 {dimension_numbers = #tpu.dot_dimension_numbers<[1], [0], [0], [1], [0, 0, 1, 1], [], []>} : vector<8x384xbf16>, vector<384x128xbf16>, vector<8x128xf32> -> vector<8x128xf32>
    %c0_9 = arith.constant 0 : index
    %c0_10 = arith.constant 0 : index
    %12 = vector.load %arg5[%c0_9, %c0_10] : memref<1x128xf32, #tpu.memory_space<vmem>>, vector<1x128xf32>
    %13 = vector.broadcast %12 : vector<1x128xf32> to vector<8x128xf32>
    %14 = arith.addf %11, %13 : vector<8x128xf32>
    %cst_11 = arith.constant 0.000000e+00 : f32
    %15 = vector.broadcast %cst_11 : f32 to vector<8x128xf32>
    %16 = arith.maximumf %14, %15 : vector<8x128xf32>
    %17 = arith.truncf %16 : vector<8x128xf32> to vector<8x128xbf16>
    %c0_12 = arith.constant 0 : index
    %c0_13 = arith.constant 0 : index
    %18 = vector.load %arg6[%c0_12, %c0_13] : memref<128x128xbf16, #tpu.memory_space<vmem>>, vector<128x128xbf16>
    %cst_14 = arith.constant dense<0.000000e+00> : vector<8x128xf32>
    %19 = tpu.matmul %17, %18, %cst_14 {dimension_numbers = #tpu.dot_dimension_numbers<[1], [0], [0], [1], [0, 0, 1, 1], [], []>} : vector<8x128xbf16>, vector<128x128xbf16>, vector<8x128xf32> -> vector<8x128xf32>
    %c0_15 = arith.constant 0 : index
    %c0_16 = arith.constant 0 : index
    %20 = vector.load %arg7[%c0_15, %c0_16] : memref<1x128xf32, #tpu.memory_space<vmem>>, vector<1x128xf32>
    %21 = vector.broadcast %20 : vector<1x128xf32> to vector<8x128xf32>
    %22 = arith.addf %19, %21 : vector<8x128xf32>
    %cst_17 = arith.constant 0.000000e+00 : f32
    %23 = vector.broadcast %cst_17 : f32 to vector<8x128xf32>
    %24 = arith.maximumf %22, %23 : vector<8x128xf32>
    %25 = arith.truncf %24 : vector<8x128xf32> to vector<8x128xbf16>
    %c0_18 = arith.constant 0 : index
    %c0_19 = arith.constant 0 : index
    %26 = vector.load %arg8[%c0_18, %c0_19] : memref<128x128xbf16, #tpu.memory_space<vmem>>, vector<128x128xbf16>
    %cst_20 = arith.constant dense<0.000000e+00> : vector<8x128xf32>
    %27 = tpu.matmul %25, %26, %cst_20 {dimension_numbers = #tpu.dot_dimension_numbers<[1], [0], [0], [1], [0, 0, 1, 1], [], []>} : vector<8x128xbf16>, vector<128x128xbf16>, vector<8x128xf32> -> vector<8x128xf32>
    %c0_21 = arith.constant 0 : index
    %c0_22 = arith.constant 0 : index
    %28 = vector.load %arg9[%c0_21, %c0_22] : memref<1x128xf32, #tpu.memory_space<vmem>>, vector<1x128xf32>
    %29 = vector.broadcast %28 : vector<1x128xf32> to vector<8x128xf32>
    %30 = arith.addf %27, %29 : vector<8x128xf32>
    %31 = arith.truncf %30 : vector<8x128xf32> to vector<8x128xbf16>
    %c0_23 = arith.constant 0 : index
    %c0_24 = arith.constant 0 : index
    %32 = vector.load %arg10[%c0_23, %c0_24] : memref<8x128xbf16, #tpu.memory_space<vmem>>, vector<8x128xbf16>
    tpu.vector_store %arg10[%c0_23, %c0_24], %31 {strides = array<i32>} : memref<8x128xbf16, #tpu.memory_space<vmem>>, vector<8x128xbf16>,
    return
  }
  func.func @transform_0(%arg0: i32) -> (i32, i32) {
    %c0_i32 = arith.constant 0 : i32
    %c0_i32_0 = arith.constant 0 : i32
    return %arg0, %c0_i32 : i32, i32
  }
  func.func @transform_1(%arg0: i32) -> (i32, i32) {
    %c0_i32 = arith.constant 0 : i32
    %c0_i32_0 = arith.constant 0 : i32
    %c0_i32_1 = arith.constant 0 : i32
    return %c0_i32, %c0_i32_0 : i32, i32
  }
  func.func @transform_2(%arg0: i32) -> (i32, i32) {
    %c0_i32 = arith.constant 0 : i32
    %c0_i32_0 = arith.constant 0 : i32
    %c0_i32_1 = arith.constant 0 : i32
    return %c0_i32, %c0_i32_0 : i32, i32
  }
  func.func @transform_3(%arg0: i32) -> (i32, i32) {
    %c0_i32 = arith.constant 0 : i32
    %c0_i32_0 = arith.constant 0 : i32
    %c0_i32_1 = arith.constant 0 : i32
    return %c0_i32, %c0_i32_0 : i32, i32
  }
  func.func @transform_4(%arg0: i32) -> (i32, i32) {
    %c0_i32 = arith.constant 0 : i32
    %c0_i32_0 = arith.constant 0 : i32
    %c0_i32_1 = arith.constant 0 : i32
    return %c0_i32, %c0_i32_0 : i32, i32
  }
  func.func @transform_5(%arg0: i32) -> (i32, i32) {
    %c0_i32 = arith.constant 0 : i32
    %c0_i32_0 = arith.constant 0 : i32
    %c0_i32_1 = arith.constant 0 : i32
    return %c0_i32, %c0_i32_0 : i32, i32
  }
  func.func @transform_6(%arg0: i32) -> (i32, i32) {
    %c0_i32 = arith.constant 0 : i32
    %c0_i32_0 = arith.constant 0 : i32
    %c0_i32_1 = arith.constant 0 : i32
    return %c0_i32, %c0_i32_0 : i32, i32
  }
  func.func @transform_7(%arg0: i32) -> (i32, i32) {
    %c0_i32 = arith.constant 0 : i32
    %c0_i32_0 = arith.constant 0 : i32
    %c0_i32_1 = arith.constant 0 : i32
    return %c0_i32, %c0_i32_0 : i32, i32
  }
  func.func @transform_8(%arg0: i32) -> (i32, i32) {
    %c0_i32 = arith.constant 0 : i32
    %c0_i32_0 = arith.constant 0 : i32
    %c0_i32_1 = arith.constant 0 : i32
    return %c0_i32, %c0_i32_0 : i32, i32
  }
  func.func @transform_9(%arg0: i32) -> (i32, i32) {
    %c0_i32 = arith.constant 0 : i32
    %c0_i32_0 = arith.constant 0 : i32
    return %arg0, %c0_i32 : i32, i32
  }
}

</mosaic_0001>

<llo_original>
// kernel: neural_net_forward.1
$region0: #{neural_net_forward.1}
  #allocation0 [shape = 'u32[]', space=smem, size = 0x4, offset = 0x4, fixed_abs, tag = 'smem constant byte address 0x4 - core index']
  #allocation1 [shape = 'u32[72,128]{1,0:T(1,128)}', space=vmem, size = 0x9000, scoped, tag = 'internal scratch']
  %s0 = inlined_call_operand.vmem [shape: f32[8,600], index: 0, kind: input, shape index: {}]
  %s1 = inlined_call_operand.hbm [shape: bf16[600,384], index: 1, kind: input, shape index: {}]
  %s2 = inlined_call_operand.vmem [shape: f32[1,384], index: 2, kind: input, shape index: {}]
  %s3 = inlined_call_operand.hbm [shape: bf16[384,128], index: 3, kind: input, shape index: {}]
  %s4 = inlined_call_operand.vmem [shape: f32[1,128], index: 4, kind: input, shape index: {}]
  %s5 = inlined_call_operand.vmem [shape: bf16[128,128], index: 5, kind: input, shape index: {}]
  %s6 = inlined_call_operand.vmem [shape: f32[1,128], index: 6, kind: input, shape index: {}]
  %s7 = inlined_call_operand.hbm [shape: bf16[128,128], index: 7, kind: input, shape index: {}]
  %s8 = inlined_call_operand.vmem [shape: f32[1,128], index: 8, kind: input, shape index: {}]
  %s9 = inlined_call_operand.vmem [shape: bf16[8,128], index: 9, kind: output, shape index: {}]
  %s10 = sld [smem:[#allocation0]]
  $region58: #{neural_net_forward.1} parent=0
    _
  %s12 = ssub.s32 1, %s10
  %s13 = scalar_select 0, %s12, %s10
  $region1: #{neural_net_forward.1} parent=0
    #allocation2 [shape = 'u8[460800]{0}', space=vmem, size = 0x70800, scoped, tag = 'input window, operand 1, single buffered']
    #allocation3 [shape = 's32[1]{0}', space=sflag, size = 0x4, scoped, tag = 'scoped memory for neural_net_forward.1']
    #allocation4 [shape = 'u8[98304]{0}', space=vmem, size = 0x18000, scoped, tag = 'input window, operand 3, single buffered']
    #allocation5 [shape = 's32[1]{0}', space=sflag, size = 0x4, scoped, tag = 'scoped memory for neural_net_forward.1']
    #allocation6 [shape = 'u8[32768]{0}', space=vmem, size = 0x8000, scoped, tag = 'input window, operand 7, single buffered']
    %14 = vsyncpa [#allocation3], 0
    %15 = vsyncpa [#allocation5], 0
    // Predicated region
    $region2: #{neural_net_forward.1} parent=1 // pred_check
      _
    $region3: #{neural_net_forward.1} parent=1 // pred_check_branch
      %17 = sbr.rel (0) target = $region5
    $region4: #{neural_net_forward.1} parent=1 // pred_region
      _
    $region5: #{neural_net_forward.1} parent=1 // pred_fallthru
      _
    // Predicated region
    $region6: #{neural_net_forward.1} parent=1 // pred_check
      _
    $region7: #{neural_net_forward.1} parent=1 // pred_check_branch
      %19 = sbr.rel (0) target = $region9
    $region8: #{neural_net_forward.1} parent=1 // pred_region
      %21 = vsyncadd [#allocation3], 0
      %s22 = sshll.u32 %s1, 4
      %s23 = int_to_ptr.hbm [resolvable:$true] %s22
      %s24 = sshll.u32 [#allocation2], 4
      %s25 = int_to_ptr.vmem [resolvable:$true] %s24
      %30 = dma.hbm_to_vmem [thread:$0]  %s23, 14400, %s25, [#allocation3], 192, 192, 12
    $region9: #{neural_net_forward.1} parent=1 // pred_fallthru
      _
    // Predicated region
    $region10: #{neural_net_forward.1} parent=1 // pred_check
      _
    $region11: #{neural_net_forward.1} parent=1 // pred_check_branch
      %32 = sbr.rel (0) target = $region13
    $region12: #{neural_net_forward.1} parent=1 // pred_region
      _
    $region13: #{neural_net_forward.1} parent=1 // pred_fallthru
      _
    // Predicated region
    $region14: #{neural_net_forward.1} parent=1 // pred_check
      _
    $region15: #{neural_net_forward.1} parent=1 // pred_check_branch
      %34 = sbr.rel (0) target = $region17
    $region16: #{neural_net_forward.1} parent=1 // pred_region
      %36 = vsyncadd [#allocation5], 0
      %s37 = sshll.u32 %s3, 4
      %s38 = int_to_ptr.hbm [resolvable:$true] %s37
      %s39 = sshll.u32 [#allocation4], 4
      %s40 = int_to_ptr.vmem [resolvable:$true] %s39
      %45 = dma.hbm_to_vmem [thread:$0]  %s38, 3072, %s40, [#allocation5], 64, 64, 4
    $region17: #{neural_net_forward.1} parent=1 // pred_fallthru
      _
    // Predicated region
    $region18: #{neural_net_forward.1} parent=1 // pred_check
      _
    $region19: #{neural_net_forward.1} parent=1 // pred_check_branch
      %47 = sbr.rel (0) target = $region21
    $region20: #{neural_net_forward.1} parent=1 // pred_region
      _
    $region21: #{neural_net_forward.1} parent=1 // pred_fallthru
      _
    // Predicated region
    $region22: #{neural_net_forward.1} parent=1 // pred_check
      _
    $region23: #{neural_net_forward.1} parent=1 // pred_check_branch
      %49 = sbr.rel (0) target = $region25
    $region24: #{neural_net_forward.1} parent=1 // pred_region
      _
    $region25: #{neural_net_forward.1} parent=1 // pred_fallthru
      _
    // Predicated region
    $region26: #{neural_net_forward.1} parent=1 // pred_check
      _
    $region27: #{neural_net_forward.1} parent=1 // pred_check_branch
      %51 = sbr.rel (0) target = $region29
    $region28: #{neural_net_forward.1} parent=1 // pred_region
      _
    $region29: #{neural_net_forward.1} parent=1 // pred_fallthru
      _
    // Predicated region
    $region30: #{neural_net_forward.1} parent=1 // pred_check
      _
    $region31: #{neural_net_forward.1} parent=1 // pred_check_branch
      %53 = sbr.rel (0) target = $region33
    $region32: #{neural_net_forward.1} parent=1 // pred_region
      %55 = vsyncadd [#allocation5], 0
      %s56 = sshll.u32 %s7, 4
      %s57 = int_to_ptr.hbm [resolvable:$true] %s56
      %s58 = sshll.u32 [#allocation6], 4
      %s59 = int_to_ptr.vmem [resolvable:$true] %s58
      %64 = dma.hbm_to_vmem [thread:$0]  %s57, 1024, %s59, [#allocation5], 64, 64, 4
    $region33: #{neural_net_forward.1} parent=1 // pred_fallthru
      _
    // Predicated region
    $region34: #{neural_net_forward.1} parent=1 // pred_check
      _
    $region35: #{neural_net_forward.1} parent=1 // pred_check_branch
      %66 = sbr.rel (0) target = $region37
    $region36: #{neural_net_forward.1} parent=1 // pred_region
      _
    $region37: #{neural_net_forward.1} parent=1 // pred_fallthru
      _
    // Predicated region
    $region38: #{neural_net_forward.1} parent=1 // pred_check
      _
    $region39: #{neural_net_forward.1} parent=1 // pred_check_branch
      %68 = sbr.rel (0) target = $region41
    $region40: #{neural_net_forward.1} parent=1 // pred_region
      %70 = dma.done [#allocation3], 14400
    $region41: #{neural_net_forward.1} parent=1 // pred_fallthru
      _
    // Predicated region
    $region42: #{neural_net_forward.1} parent=1 // pred_check
      _
    $region43: #{neural_net_forward.1} parent=1 // pred_check_branch
      %72 = sbr.rel (0) target = $region45
    $region44: #{neural_net_forward.1} parent=1 // pred_region
      %74 = dma.done [#allocation5], 3072
    $region45: #{neural_net_forward.1} parent=1 // pred_fallthru
      _
    // Predicated region
    $region46: #{neural_net_forward.1} parent=1 // pred_check
      _
    $region47: #{neural_net_forward.1} parent=1 // pred_check_branch
      %76 = sbr.rel (0) target = $region49
    $region48: #{neural_net_forward.1} parent=1 // pred_region
      %78 = dma.done [#allocation5], 1024
    $region49: #{neural_net_forward.1} parent=1 // pred_fallthru
      _
    %v80 = vld [vmem:[%s0] sm:$0xff]
    %v81 = vld [vmem:[%s0 + $0x8] sm:$0xff]
    %v82 = vld [vmem:[%s0 + $0x10] sm:$0xff]
    %v83 = vld [vmem:[%s0 + $0x18] sm:$0xff]
    %v84 = vld [vmem:[%s0 + $0x20] sm:$0xff]
    %v85 = vpack.c.bf16 %v80, %v80
    %v86 = vpack.c.bf16 %v81, %v81
    %v87 = vpack.c.bf16 %v82, %v82
    %v88 = vpack.c.bf16 %v83, %v83
    %v89 = vpack.c.bf16 %v84, %v84
    %v90 = vld [vmem:[#allocation2] sm:$0xff]
    %v91 = vld [vmem:[#allocation2 + $0x8] sm:$0xf]
    %v92 = vld [vmem:[#allocation2 + $0xc] sm:$0xff]
    %v93 = vld [vmem:[#allocation2 + $0x14] sm:$0xf]
    %v94 = vld [vmem:[#allocation2 + $0x18] sm:$0xff]
    %v95 = vld [vmem:[#allocation2 + $0x20] sm:$0xf]
    %v96 = vld [vmem:[#allocation2 + $0x24] sm:$0xff]
    %v97 = vld [vmem:[#allocation2 + $0x2c] sm:$0xf]
    %v98 = vld [vmem:[#allocation2 + $0x30] sm:$0xff]
    %v99 = vld [vmem:[#allocation2 + $0x38] sm:$0xf]
    %v100 = vld [vmem:[#allocation2 + $0x3c] sm:$0xff]
    %v101 = vld [vmem:[#allocation2 + $0x44] sm:$0xf]
    %v102 = vld [vmem:[#allocation2 + $0x48] sm:$0xff]
    %v103 = vld [vmem:[#allocation2 + $0x50] sm:$0xf]
    %v104 = vld [vmem:[#allocation2 + $0x54] sm:$0xff]
    %v105 = vld [vmem:[#allocation2 + $0x5c] sm:$0xf]
    %v106 = vld [vmem:[#allocation2 + $0x60] sm:$0xff]
    %v107 = vld [vmem:[#allocation2 + $0x68] sm:$0xf]
    %v108 = vld [vmem:[#allocation2 + $0x6c] sm:$0xff]
    %v109 = vld [vmem:[#allocation2 + $0x74] sm:$0xf]
    %v110 = vld [vmem:[#allocation2 + $0x78] sm:$0xff]
    %v111 = vld [vmem:[#allocation2 + $0x80] sm:$0xf]
    %v112 = vld [vmem:[#allocation2 + $0x84] sm:$0xff]
    %v113 = vld [vmem:[#allocation2 + $0x8c] sm:$0xf]
    %v114 = vld [vmem:[#allocation2 + $0x90] sm:$0xff]
    %v115 = vld [vmem:[#allocation2 + $0x98] sm:$0xf]
    %v116 = vld [vmem:[#allocation2 + $0x9c] sm:$0xff]
    %v117 = vld [vmem:[#allocation2 + $0xa4] sm:$0xf]
    %v118 = vld [vmem:[#allocation2 + $0xa8] sm:$0xff]
    %v119 = vld [vmem:[#allocation2 + $0xb0] sm:$0xf]
    %v120 = vld [vmem:[#allocation2 + $0xb4] sm:$0xff]
    %v121 = vld [vmem:[#allocation2 + $0xbc] sm:$0xf]
    %v122 = vld [vmem:[#allocation2 + $0xc0] sm:$0xff]
    %v123 = vld [vmem:[#allocation2 + $0xc8] sm:$0xf]
    %v124 = vld [vmem:[#allocation2 + $0xcc] sm:$0xff]
    %v125 = vld [vmem:[#allocation2 + $0xd4] sm:$0xf]
    %v126 = vld [vmem:[#allocation2 + $0xd8] sm:$0xff]
    %v127 = vld [vmem:[#allocation2 + $0xe0] sm:$0xf]
    %v128 = vld [vmem:[#allocation2 + $0xe4] sm:$0xff]
    %v129 = vld [vmem:[#allocation2 + $0xec] sm:$0xf]
    %v130 = vld [vmem:[#allocation2 + $0xf0] sm:$0xff]
    %v131 = vld [vmem:[#allocation2 + $0xf8] sm:$0xf]
    %v132 = vld [vmem:[#allocation2 + $0xfc] sm:$0xff]
    %v133 = vld [vmem:[#allocation2 + $0x104] sm:$0xf]
    %v134 = vld [vmem:[#allocation2 + $0x108] sm:$0xff]
    %v135 = vld [vmem:[#allocation2 + $0x110] sm:$0xf]
    %v136 = vld [vmem:[#allocation2 + $0x114] sm:$0xff]
    %v137 = vld [vmem:[#allocation2 + $0x11c] sm:$0xf]
    %v138 = vld [vmem:[#allocation2 + $0x120] sm:$0xff]
    %v139 = vld [vmem:[#allocation2 + $0x128] sm:$0xf]
    %v140 = vld [vmem:[#allocation2 + $0x12c] sm:$0xff]
    %v141 = vld [vmem:[#allocation2 + $0x134] sm:$0xf]
    %v142 = vld [vmem:[#allocation2 + $0x138] sm:$0xff]
    %v143 = vld [vmem:[#allocation2 + $0x140] sm:$0xf]
    %v144 = vld [vmem:[#allocation2 + $0x144] sm:$0xff]
    %v145 = vld [vmem:[#allocation2 + $0x14c] sm:$0xf]
    %v146 = vld [vmem:[#allocation2 + $0x150] sm:$0xff]
    %v147 = vld [vmem:[#allocation2 + $0x158] sm:$0xf]
    %v148 = vld [vmem:[#allocation2 + $0x15c] sm:$0xff]
    %v149 = vld [vmem:[#allocation2 + $0x164] sm:$0xf]
    %v150 = vld [vmem:[#allocation2 + $0x168] sm:$0xff]
    %v151 = vld [vmem:[#allocation2 + $0x170] sm:$0xf]
    %v152 = vld [vmem:[#allocation2 + $0x174] sm:$0xff]
    %v153 = vld [vmem:[#allocation2 + $0x17c] sm:$0xf]
    %v154 = vld [vmem:[#allocation2 + $0x180] sm:$0xff]
    %v155 = vld [vmem:[#allocation2 + $0x188] sm:$0xf]
    %v156 = vld [vmem:[#allocation2 + $0x18c] sm:$0xff]
    %v157 = vld [vmem:[#allocation2 + $0x194] sm:$0xf]
    %v158 = vld [vmem:[#allocation2 + $0x198] sm:$0xff]
    %v159 = vld [vmem:[#allocation2 + $0x1a0] sm:$0xf]
    %v160 = vld [vmem:[#allocation2 + $0x1a4] sm:$0xff]
    %v161 = vld [vmem:[#allocation2 + $0x1ac] sm:$0xf]
    %v162 = vld [vmem:[#allocation2 + $0x1b0] sm:$0xff]
    %v163 = vld [vmem:[#allocation2 + $0x1b8] sm:$0xf]
    %v164 = vld [vmem:[#allocation2 + $0x1bc] sm:$0xff]
    %v165 = vld [vmem:[#allocation2 + $0x1c4] sm:$0xf]
    %v166 = vld [vmem:[#allocation2 + $0x1c8] sm:$0xff]
    %v167 = vld [vmem:[#allocation2 + $0x1d0] sm:$0xf]
    %v168 = vld [vmem:[#allocation2 + $0x1d4] sm:$0xff]
    %v169 = vld [vmem:[#allocation2 + $0x1dc] sm:$0xf]
    %v170 = vld [vmem:[#allocation2 + $0x1e0] sm:$0xff]
    %v171 = vld [vmem:[#allocation2 + $0x1e8] sm:$0xf]
    %v172 = vld [vmem:[#allocation2 + $0x1ec] sm:$0xff]
    %v173 = vld [vmem:[#allocation2 + $0x1f4] sm:$0xf]
    %v174 = vld [vmem:[#allocation2 + $0x1f8] sm:$0xff]
    %v175 = vld [vmem:[#allocation2 + $0x200] sm:$0xf]
    %v176 = vld [vmem:[#allocation2 + $0x204] sm:$0xff]
    %v177 = vld [vmem:[#allocation2 + $0x20c] sm:$0xf]
    %v178 = vld [vmem:[#allocation2 + $0x210] sm:$0xff]
    %v179 = vld [vmem:[#allocation2 + $0x218] sm:$0xf]
    %v180 = vld [vmem:[#allocation2 + $0x21c] sm:$0xff]
    %v181 = vld [vmem:[#allocation2 + $0x224] sm:$0xf]
    %v182 = vld [vmem:[#allocation2 + $0x228] sm:$0xff]
    %v183 = vld [vmem:[#allocation2 + $0x230] sm:$0xf]
    %v184 = vld [vmem:[#allocation2 + $0x234] sm:$0xff]
    %v185 = vld [vmem:[#allocation2 + $0x23c] sm:$0xf]
    %v186 = vld [vmem:[#allocation2 + $0x240] sm:$0xff]
    %v187 = vld [vmem:[#allocation2 + $0x248] sm:$0xf]
    %v188 = vld [vmem:[#allocation2 + $0x24c] sm:$0xff]
    %v189 = vld [vmem:[#allocation2 + $0x254] sm:$0xf]
    %v190 = vld [vmem:[#allocation2 + $0x258] sm:$0xff]
    %v191 = vld [vmem:[#allocation2 + $0x260] sm:$0xf]
    %v192 = vld [vmem:[#allocation2 + $0x264] sm:$0xff]
    %v193 = vld [vmem:[#allocation2 + $0x26c] sm:$0xf]
    %v194 = vld [vmem:[#allocation2 + $0x270] sm:$0xff]
    %v195 = vld [vmem:[#allocation2 + $0x278] sm:$0xf]
    %v196 = vld [vmem:[#allocation2 + $0x27c] sm:$0xff]
    %v197 = vld [vmem:[#allocation2 + $0x284] sm:$0xf]
    %v198 = vld [vmem:[#allocation2 + $0x288] sm:$0xff]
    %v199 = vld [vmem:[#allocation2 + $0x290] sm:$0xf]
    %v200 = vld [vmem:[#allocation2 + $0x294] sm:$0xff]
    %v201 = vld [vmem:[#allocation2 + $0x29c] sm:$0xf]
    %v202 = vld [vmem:[#allocation2 + $0x2a0] sm:$0xff]
    %v203 = vld [vmem:[#allocation2 + $0x2a8] sm:$0xf]
    %v204 = vld [vmem:[#allocation2 + $0x2ac] sm:$0xff]
    %v205 = vld [vmem:[#allocation2 + $0x2b4] sm:$0xf]
    %v206 = vld [vmem:[#allocation2 + $0x2b8] sm:$0xff]
    %v207 = vld [vmem:[#allocation2 + $0x2c0] sm:$0xf]
    %v208 = vld [vmem:[#allocation2 + $0x2c4] sm:$0xff]
    %v209 = vld [vmem:[#allocation2 + $0x2cc] sm:$0xf]
    %v210 = vld [vmem:[#allocation2 + $0x2d0] sm:$0xff]
    %v211 = vld [vmem:[#allocation2 + $0x2d8] sm:$0xf]
    %v212 = vld [vmem:[#allocation2 + $0x2dc] sm:$0xff]
    %v213 = vld [vmem:[#allocation2 + $0x2e4] sm:$0xf]
    %v214 = vld [vmem:[#allocation2 + $0x2e8] sm:$0xff]
    %v215 = vld [vmem:[#allocation2 + $0x2f0] sm:$0xf]
    %v216 = vld [vmem:[#allocation2 + $0x2f4] sm:$0xff]
    %v217 = vld [vmem:[#allocation2 + $0x2fc] sm:$0xf]
    %v218 = vld [vmem:[#allocation2 + $0x300] sm:$0xff]
    %v219 = vld [vmem:[#allocation2 + $0x308] sm:$0xf]
    %v220 = vld [vmem:[#allocation2 + $0x30c] sm:$0xff]
    %v221 = vld [vmem:[#allocation2 + $0x314] sm:$0xf]
    %v222 = vld [vmem:[#allocation2 + $0x318] sm:$0xff]
    %v223 = vld [vmem:[#allocation2 + $0x320] sm:$0xf]
    %v224 = vld [vmem:[#allocation2 + $0x324] sm:$0xff]
    %v225 = vld [vmem:[#allocation2 + $0x32c] sm:$0xf]
    %v226 = vld [vmem:[#allocation2 + $0x330] sm:$0xff]
    %v227 = vld [vmem:[#allocation2 + $0x338] sm:$0xf]
    %v228 = vld [vmem:[#allocation2 + $0x33c] sm:$0xff]
    %v229 = vld [vmem:[#allocation2 + $0x344] sm:$0xf]
    %v230 = vld [vmem:[#allocation2 + $0x348] sm:$0xff]
    %v231 = vld [vmem:[#allocation2 + $0x350] sm:$0xf]
    %v232 = vld [vmem:[#allocation2 + $0x354] sm:$0xff]
    %v233 = vld [vmem:[#allocation2 + $0x35c] sm:$0xf]
    %v234 = vld [vmem:[#allocation2 + $0x360] sm:$0xff]
    %v235 = vld [vmem:[#allocation2 + $0x368] sm:$0xf]
    %v236 = vld [vmem:[#allocation2 + $0x36c] sm:$0xff]
    %v237 = vld [vmem:[#allocation2 + $0x374] sm:$0xf]
    %v238 = vld [vmem:[#allocation2 + $0x378] sm:$0xff]
    %v239 = vld [vmem:[#allocation2 + $0x380] sm:$0xf]
    %v240 = vld [vmem:[%s2] sm:$0x7]
    %v242 = vperm.slane %v240, 0
    %v243 = vperm.slane %v240, 1
    %v244 = vperm.slane %v240, 2
    %v398 = vunpack.c.l.b16 %v90
    %v399 = vunpack.c.h.b16 %v90
    %v400 = vunpack.c.l.b16 %v91
    %v401 = vunpack.c.l.b16 %v92
    %v402 = vunpack.c.h.b16 %v92
    %v403 = vunpack.c.l.b16 %v93
    %v404 = vunpack.c.l.b16 %v94
    %v405 = vunpack.c.h.b16 %v94
    %v406 = vunpack.c.l.b16 %v95
    %v407 = vunpack.c.l.b16 %v96
    %v408 = vunpack.c.h.b16 %v96
    %v409 = vunpack.c.l.b16 %v97
    %v410 = vunpack.c.l.b16 %v98
    %v411 = vunpack.c.h.b16 %v98
    %v412 = vunpack.c.l.b16 %v99
    %v413 = vunpack.c.l.b16 %v100
    %v414 = vunpack.c.h.b16 %v100
    %v415 = vunpack.c.l.b16 %v101
    %v416 = vunpack.c.l.b16 %v102
    %v417 = vunpack.c.h.b16 %v102
    %v418 = vunpack.c.l.b16 %v103
    %v419 = vunpack.c.l.b16 %v104
    %v420 = vunpack.c.h.b16 %v104
    %v421 = vunpack.c.l.b16 %v105
    %v422 = vunpack.c.l.b16 %v106
    %v423 = vunpack.c.h.b16 %v106
    %v424 = vunpack.c.l.b16 %v107
    %v425 = vunpack.c.l.b16 %v108
    %v426 = vunpack.c.h.b16 %v108
    %v427 = vunpack.c.l.b16 %v109
    %v428 = vunpack.c.l.b16 %v110
    %v429 = vunpack.c.h.b16 %v110
    %v430 = vunpack.c.l.b16 %v111
    %v431 = vunpack.c.l.b16 %v112
    %v432 = vunpack.c.h.b16 %v112
    %v433 = vunpack.c.l.b16 %v113
    %v434 = vunpack.c.l.b16 %v114
    %v435 = vunpack.c.h.b16 %v114
    %v436 = vunpack.c.l.b16 %v115
    %v437 = vunpack.c.l.b16 %v116
    %v438 = vunpack.c.h.b16 %v116
    %v439 = vunpack.c.l.b16 %v117
    %v440 = vunpack.c.l.b16 %v118
    %v441 = vunpack.c.h.b16 %v118
    %v442 = vunpack.c.l.b16 %v119
    %v443 = vunpack.c.l.b16 %v120
    %v444 = vunpack.c.h.b16 %v120
    %v445 = vunpack.c.l.b16 %v121
    %v446 = vunpack.c.l.b16 %v122
    %v447 = vunpack.c.h.b16 %v122
    %v448 = vunpack.c.l.b16 %v123
    %v449 = vunpack.c.l.b16 %v124
    %v450 = vunpack.c.h.b16 %v124
    %v451 = vunpack.c.l.b16 %v125
    %v452 = vunpack.c.l.b16 %v126
    %v453 = vunpack.c.h.b16 %v126
    %v454 = vunpack.c.l.b16 %v127
    %v455 = vunpack.c.l.b16 %v128
    %v456 = vunpack.c.h.b16 %v128
    %v457 = vunpack.c.l.b16 %v129
    %v458 = vunpack.c.l.b16 %v130
    %v459 = vunpack.c.h.b16 %v130
    %v460 = vunpack.c.l.b16 %v131
    %v461 = vunpack.c.l.b16 %v132
    %v462 = vunpack.c.h.b16 %v132
    %v463 = vunpack.c.l.b16 %v133
    %v464 = vunpack.c.l.b16 %v134
    %v465 = vunpack.c.h.b16 %v134
    %v466 = vunpack.c.l.b16 %v135
    %v467 = vunpack.c.l.b16 %v136
    %v468 = vunpack.c.h.b16 %v136
    %v469 = vunpack.c.l.b16 %v137
    %v470 = vunpack.c.l.b16 %v138
    %v471 = vunpack.c.h.b16 %v138
    %v472 = vunpack.c.l.b16 %v139
    %v473 = vunpack.c.l.b16 %v140
    %v474 = vunpack.c.h.b16 %v140
    %v475 = vunpack.c.l.b16 %v141
    %v476 = vunpack.c.l.b16 %v142
    %v477 = vunpack.c.h.b16 %v142
    %v478 = vunpack.c.l.b16 %v143
    %v479 = vunpack.c.l.b16 %v144
    %v480 = vunpack.c.h.b16 %v144
    %v481 = vunpack.c.l.b16 %v145
    %v482 = vunpack.c.l.b16 %v146
    %v483 = vunpack.c.h.b16 %v146
    %v484 = vunpack.c.l.b16 %v147
    %v485 = vunpack.c.l.b16 %v148
    %v486 = vunpack.c.h.b16 %v148
    %v487 = vunpack.c.l.b16 %v149
    %v488 = vunpack.c.l.b16 %v150
    %v489 = vunpack.c.h.b16 %v150
    %v490 = vunpack.c.l.b16 %v151
    %v491 = vunpack.c.l.b16 %v152
    %v492 = vunpack.c.h.b16 %v152
    %v493 = vunpack.c.l.b16 %v153
    %v494 = vunpack.c.l.b16 %v154
    %v495 = vunpack.c.h.b16 %v154
    %v496 = vunpack.c.l.b16 %v155
    %v497 = vunpack.c.l.b16 %v156
    %v498 = vunpack.c.h.b16 %v156
    %v499 = vunpack.c.l.b16 %v157
    %v500 = vunpack.c.l.b16 %v158
    %v501 = vunpack.c.h.b16 %v158
    %v502 = vunpack.c.l.b16 %v159
    %v503 = vunpack.c.l.b16 %v160
    %v504 = vunpack.c.h.b16 %v160
    %v505 = vunpack.c.l.b16 %v161
    %v506 = vunpack.c.l.b16 %v162
    %v507 = vunpack.c.h.b16 %v162
    %v508 = vunpack.c.l.b16 %v163
    %v509 = vunpack.c.l.b16 %v164
    %v510 = vunpack.c.h.b16 %v164
    %v511 = vunpack.c.l.b16 %v165
    %v512 = vunpack.c.l.b16 %v166
    %v513 = vunpack.c.h.b16 %v166
    %v514 = vunpack.c.l.b16 %v167
    %v515 = vunpack.c.l.b16 %v168
    %v516 = vunpack.c.h.b16 %v168
    %v517 = vunpack.c.l.b16 %v169
    %v518 = vunpack.c.l.b16 %v170
    %v519 = vunpack.c.h.b16 %v170
    %v520 = vunpack.c.l.b16 %v171
    %v521 = vunpack.c.l.b16 %v172
    %v522 = vunpack.c.h.b16 %v172
    %v523 = vunpack.c.l.b16 %v173
    %v524 = vunpack.c.l.b16 %v174
    %v525 = vunpack.c.h.b16 %v174
    %v526 = vunpack.c.l.b16 %v175
    %v527 = vunpack.c.l.b16 %v176
    %v528 = vunpack.c.h.b16 %v176
    %v529 = vunpack.c.l.b16 %v177
    %v530 = vunpack.c.l.b16 %v178
    %v531 = vunpack.c.h.b16 %v178
    %v532 = vunpack.c.l.b16 %v179
    %v533 = vunpack.c.l.b16 %v180
    %v534 = vunpack.c.h.b16 %v180
    %v535 = vunpack.c.l.b16 %v181
    %v536 = vunpack.c.l.b16 %v182
    %v537 = vunpack.c.h.b16 %v182
    %v538 = vunpack.c.l.b16 %v183
    %v539 = vunpack.c.l.b16 %v184
    %v540 = vunpack.c.h.b16 %v184
    %v541 = vunpack.c.l.b16 %v185
    %v542 = vunpack.c.l.b16 %v186
    %v543 = vunpack.c.h.b16 %v186
    %v544 = vunpack.c.l.b16 %v187
    %v545 = vunpack.c.l.b16 %v188
    %v546 = vunpack.c.h.b16 %v188
    %v547 = vunpack.c.l.b16 %v189
    %v548 = vunpack.c.l.b16 %v190
    %v549 = vunpack.c.h.b16 %v190
    %v550 = vunpack.c.l.b16 %v191
    %v551 = vunpack.c.l.b16 %v192
    %v552 = vunpack.c.h.b16 %v192
    %v553 = vunpack.c.l.b16 %v193
    %v554 = vunpack.c.l.b16 %v194
    %v555 = vunpack.c.h.b16 %v194
    %v556 = vunpack.c.l.b16 %v195
    %v557 = vunpack.c.l.b16 %v196
    %v558 = vunpack.c.h.b16 %v196
    %v559 = vunpack.c.l.b16 %v197
    %v560 = vunpack.c.l.b16 %v198
    %v561 = vunpack.c.h.b16 %v198
    %v562 = vunpack.c.l.b16 %v199
    %v563 = vunpack.c.l.b16 %v200
    %v564 = vunpack.c.h.b16 %v200
    %v565 = vunpack.c.l.b16 %v201
    %v566 = vunpack.c.l.b16 %v202
    %v567 = vunpack.c.h.b16 %v202
    %v568 = vunpack.c.l.b16 %v203
    %v569 = vunpack.c.l.b16 %v204
    %v570 = vunpack.c.h.b16 %v204
    %v571 = vunpack.c.l.b16 %v205
    %v572 = vunpack.c.l.b16 %v206
    %v573 = vunpack.c.h.b16 %v206
    %v574 = vunpack.c.l.b16 %v207
    %v575 = vunpack.c.l.b16 %v208
    %v576 = vunpack.c.h.b16 %v208
    %v577 = vunpack.c.l.b16 %v209
    %v578 = vunpack.c.l.b16 %v210
    %v579 = vunpack.c.h.b16 %v210
    %v580 = vunpack.c.l.b16 %v211
    %v581 = vunpack.c.l.b16 %v212
    %v582 = vunpack.c.h.b16 %v212
    %v583 = vunpack.c.l.b16 %v213
    %v584 = vunpack.c.l.b16 %v214
    %v585 = vunpack.c.h.b16 %v214
    %v586 = vunpack.c.l.b16 %v215
    %v587 = vunpack.c.l.b16 %v216
    %v588 = vunpack.c.h.b16 %v216
    %v589 = vunpack.c.l.b16 %v217
    %v590 = vunpack.c.l.b16 %v218
    %v591 = vunpack.c.h.b16 %v218
    %v592 = vunpack.c.l.b16 %v219
    %v593 = vunpack.c.l.b16 %v220
    %v594 = vunpack.c.h.b16 %v220
    %v595 = vunpack.c.l.b16 %v221
    %v596 = vunpack.c.l.b16 %v222
    %v597 = vunpack.c.h.b16 %v222
    %v598 = vunpack.c.l.b16 %v223
    %v599 = vunpack.c.l.b16 %v224
    %v600 = vunpack.c.h.b16 %v224
    %v601 = vunpack.c.l.b16 %v225
    %v602 = vunpack.c.l.b16 %v226
    %v603 = vunpack.c.h.b16 %v226
    %v604 = vunpack.c.l.b16 %v227
    %v605 = vunpack.c.l.b16 %v228
    %v606 = vunpack.c.h.b16 %v228
    %v607 = vunpack.c.l.b16 %v229
    %v608 = vunpack.c.l.b16 %v230
    %v609 = vunpack.c.h.b16 %v230
    %v610 = vunpack.c.l.b16 %v231
    %v611 = vunpack.c.l.b16 %v232
    %v612 = vunpack.c.h.b16 %v232
    %v613 = vunpack.c.l.b16 %v233
    %v614 = vunpack.c.l.b16 %v234
    %v615 = vunpack.c.h.b16 %v234
    %v616 = vunpack.c.l.b16 %v235
    %v617 = vunpack.c.l.b16 %v236
    %v618 = vunpack.c.h.b16 %v236
    %v619 = vunpack.c.l.b16 %v237
    %v620 = vunpack.c.l.b16 %v238
    %v621 = vunpack.c.h.b16 %v238
    %v622 = vunpack.c.l.b16 %v239
    %v623 = vpack.c.b16 %v401, %v398
    %v624 = vpack.c.b16 %v402, %v399
    %v625 = vpack.c.b16 %v403, %v400
    %v626 = vpack.c.b16 %v407, %v404
    %v627 = vpack.c.b16 %v408, %v405
    %v628 = vpack.c.b16 %v409, %v406
    %v629 = vpack.c.b16 %v413, %v410
    %v630 = vpack.c.b16 %v414, %v411
    %v631 = vpack.c.b16 %v415, %v412
    %v632 = vpack.c.b16 %v419, %v416
    %v633 = vpack.c.b16 %v420, %v417
    %v634 = vpack.c.b16 %v421, %v418
    %v635 = vpack.c.b16 %v425, %v422
    %v636 = vpack.c.b16 %v426, %v423
    %v637 = vpack.c.b16 %v427, %v424
    %v638 = vpack.c.b16 %v431, %v428
    %v639 = vpack.c.b16 %v432, %v429
    %v640 = vpack.c.b16 %v433, %v430
    %v641 = vpack.c.b16 %v437, %v434
    %v642 = vpack.c.b16 %v438, %v435
    %v643 = vpack.c.b16 %v439, %v436
    %v644 = vpack.c.b16 %v443, %v440
    %v645 = vpack.c.b16 %v444, %v441
    %v646 = vpack.c.b16 %v445, %v442
    %v647 = vpack.c.b16 %v449, %v446
    %v648 = vpack.c.b16 %v450, %v447
    %v649 = vpack.c.b16 %v451, %v448
    %v650 = vpack.c.b16 %v455, %v452
    %v651 = vpack.c.b16 %v456, %v453
    %v652 = vpack.c.b16 %v457, %v454
    %v653 = vpack.c.b16 %v461, %v458
    %v654 = vpack.c.b16 %v462, %v459
    %v655 = vpack.c.b16 %v463, %v460
    %v656 = vpack.c.b16 %v467, %v464
    %v657 = vpack.c.b16 %v468, %v465
    %v658 = vpack.c.b16 %v469, %v466
    %v659 = vpack.c.b16 %v473, %v470
    %v660 = vpack.c.b16 %v474, %v471
    %v661 = vpack.c.b16 %v475, %v472
    %v662 = vpack.c.b16 %v479, %v476
    %v663 = vpack.c.b16 %v480, %v477
    %v664 = vpack.c.b16 %v481, %v478
    %v665 = vpack.c.b16 %v485, %v482
    %v666 = vpack.c.b16 %v486, %v483
    %v667 = vpack.c.b16 %v487, %v484
    %v668 = vpack.c.b16 %v491, %v488
    %v669 = vpack.c.b16 %v492, %v489
    %v670 = vpack.c.b16 %v493, %v490
    %v671 = vpack.c.b16 %v497, %v494
    %v672 = vpack.c.b16 %v498, %v495
    %v673 = vpack.c.b16 %v499, %v496
    %v674 = vpack.c.b16 %v503, %v500
    %v675 = vpack.c.b16 %v504, %v501
    %v676 = vpack.c.b16 %v505, %v502
    %v677 = vpack.c.b16 %v509, %v506
    %v678 = vpack.c.b16 %v510, %v507
    %v679 = vpack.c.b16 %v511, %v508
    %v680 = vpack.c.b16 %v515, %v512
    %v681 = vpack.c.b16 %v516, %v513
    %v682 = vpack.c.b16 %v517, %v514
    %v683 = vpack.c.b16 %v521, %v518
    %v684 = vpack.c.b16 %v522, %v519
    %v685 = vpack.c.b16 %v523, %v520
    %v686 = vpack.c.b16 %v527, %v524
    %v687 = vpack.c.b16 %v528, %v525
    %v688 = vpack.c.b16 %v529, %v526
    %v689 = vpack.c.b16 %v533, %v530
    %v690 = vpack.c.b16 %v534, %v531
    %v691 = vpack.c.b16 %v535, %v532
    %v692 = vpack.c.b16 %v539, %v536
    %v693 = vpack.c.b16 %v540, %v537
    %v694 = vpack.c.b16 %v541, %v538
    %v695 = vpack.c.b16 %v545, %v542
    %v696 = vpack.c.b16 %v546, %v543
    %v697 = vpack.c.b16 %v547, %v544
    %v698 = vpack.c.b16 %v551, %v548
    %v699 = vpack.c.b16 %v552, %v549
    %v700 = vpack.c.b16 %v553, %v550
    %v701 = vpack.c.b16 %v557, %v554
    %v702 = vpack.c.b16 %v558, %v555
    %v703 = vpack.c.b16 %v559, %v556
    %v704 = vpack.c.b16 %v563, %v560
    %v705 = vpack.c.b16 %v564, %v561
    %v706 = vpack.c.b16 %v565, %v562
    %v707 = vpack.c.b16 %v569, %v566
    %v708 = vpack.c.b16 %v570, %v567
    %v709 = vpack.c.b16 %v571, %v568
    %v710 = vpack.c.b16 %v575, %v572
    %v711 = vpack.c.b16 %v576, %v573
    %v712 = vpack.c.b16 %v577, %v574
    %v713 = vpack.c.b16 %v581, %v578
    %v714 = vpack.c.b16 %v582, %v579
    %v715 = vpack.c.b16 %v583, %v580
    %v716 = vpack.c.b16 %v587, %v584
    %v717 = vpack.c.b16 %v588, %v585
    %v718 = vpack.c.b16 %v589, %v586
    %v719 = vpack.c.b16 %v593, %v590
    %v720 = vpack.c.b16 %v594, %v591
    %v721 = vpack.c.b16 %v595, %v592
    %v722 = vpack.c.b16 %v599, %v596
    %v723 = vpack.c.b16 %v600, %v597
    %v724 = vpack.c.b16 %v601, %v598
    %v725 = vpack.c.b16 %v605, %v602
    %v726 = vpack.c.b16 %v606, %v603
    %v727 = vpack.c.b16 %v607, %v604
    %v728 = vpack.c.b16 %v611, %v608
    %v729 = vpack.c.b16 %v612, %v609
    %v730 = vpack.c.b16 %v613, %v610
    %v731 = vpack.c.b16 %v617, %v614
    %v732 = vpack.c.b16 %v618, %v615
    %v733 = vpack.c.b16 %v619, %v616
    %v734 = vpack.c.b16 %v620, %v620
    %v735 = vpack.c.b16 %v621, %v621
    %v736 = vpack.c.b16 %v622, %v622
    %vm848 = vcmask 719872
    %v850 = vsel %vm848, %v89, 0
    %vm852 = vcmask 1043456
    %v854 = vsel %vm852, %v734, 0
    %v857 = vsel %vm852, %v735, 0
    %v860 = vsel %vm852, %v736, 0
    %862 = vmatpush.bf16.msra.mxu0 %v644
    %863 = vmatpush.bf16.msra.mxu0 %v641
    %864 = vmatpush.bf16.msra.mxu0 %v638
    %865 = vmatpush.bf16.msra.mxu0 %v635
    %866 = vmatpush.bf16.msra.mxu0 %v632
    %867 = vmatpush.bf16.msra.mxu0 %v629
    %868 = vmatpush.bf16.msra.mxu0 %v626
    %869 = vmatpush.bf16.msra.mxu0 %v623
    %870 = vmatmul.bf16.gmra.mxu0 %v85
    %v871 = vpop.f32.mrf.mxu0
    %v872 = vadd.f32 %v242, %v871
    %v873 = vpop.f32.mrf.mxu0
    %874 = vdwg.mxu0
    %875 = vmatpush.bf16.msra.mxu0 %v668
    %876 = vmatpush.bf16.msra.mxu0 %v665
    %877 = vmatpush.bf16.msra.mxu0 %v662
    %878 = vmatpush.bf16.msra.mxu0 %v659
    %879 = vmatpush.bf16.msra.mxu0 %v656
    %880 = vmatpush.bf16.msra.mxu0 %v653
    %881 = vmatpush.bf16.msra.mxu0 %v650
    %882 = vmatpush.bf16.msra.mxu0 %v647
    %883 = vmatmul.bf16.gmra.mxu0 %v86
    %v884 = vpop.f32.mrf.mxu0
    %v885 = vadd.f32 %v872, %v884
    %v886 = vpop.f32.mrf.mxu0
    %887 = vdwg.mxu0
    %888 = vmatpush.bf16.msra.mxu0 %v692
    %889 = vmatpush.bf16.msra.mxu0 %v689
    %890 = vmatpush.bf16.msra.mxu0 %v686
    %891 = vmatpush.bf16.msra.mxu0 %v683
    %892 = vmatpush.bf16.msra.mxu0 %v680
    %893 = vmatpush.bf16.msra.mxu0 %v677
    %894 = vmatpush.bf16.msra.mxu0 %v674
    %895 = vmatpush.bf16.msra.mxu0 %v671
    %896 = vmatmul.bf16.gmra.mxu0 %v87
    %v897 = vpop.f32.mrf.mxu0
    %v898 = vadd.f32 %v885, %v897
    %v899 = vpop.f32.mrf.mxu0
    %900 = vdwg.mxu0
    %901 = vmatpush.bf16.msra.mxu0 %v716
    %902 = vmatpush.bf16.msra.mxu0 %v713
    %903 = vmatpush.bf16.msra.mxu0 %v710
    %904 = vmatpush.bf16.msra.mxu0 %v707
    %905 = vmatpush.bf16.msra.mxu0 %v704
    %906 = vmatpush.bf16.msra.mxu0 %v701
    %907 = vmatpush.bf16.msra.mxu0 %v698
    %908 = vmatpush.bf16.msra.mxu0 %v695
    %909 = vmatmul.bf16.gmra.mxu0 %v88
    %v910 = vpop.f32.mrf.mxu0
    %v911 = vadd.f32 %v898, %v910
    %v912 = vpop.f32.mrf.mxu0
    %913 = vdwg.mxu0
    %914 = vmatpush.bf16.msra.mxu0 0
    %915 = vmatpush.bf16.msra.mxu0 0
    %916 = vmatpush.bf16.msra.mxu0 %v854
    %917 = vmatpush.bf16.msra.mxu0 %v731
    %918 = vmatpush.bf16.msra.mxu0 %v728
    %919 = vmatpush.bf16.msra.mxu0 %v725
    %920 = vmatpush.bf16.msra.mxu0 %v722
    %921 = vmatpush.bf16.msra.mxu0 %v719
    %922 = vmatmul.bf16.gmra.mxu0 %v850
    %v923 = vpop.f32.mrf.mxu0
    %v924 = vadd.f32 %v911, %v923
    %v925 = vpop.f32.mrf.mxu0
    %926 = vdwg.mxu0
    %927 = vmatpush.bf16.msra.mxu0 %v645
    %928 = vmatpush.bf16.msra.mxu0 %v642
    %929 = vmatpush.bf16.msra.mxu0 %v639
    %930 = vmatpush.bf16.msra.mxu0 %v636
    %931 = vmatpush.bf16.msra.mxu0 %v633
    %932 = vmatpush.bf16.msra.mxu0 %v630
    %933 = vmatpush.bf16.msra.mxu0 %v627
    %934 = vmatpush.bf16.msra.mxu0 %v624
    %935 = vmatmul.bf16.gmra.mxu0 %v85
    %v936 = vpop.f32.mrf.mxu0
    %v937 = vadd.f32 %v243, %v936
    %v938 = vpop.f32.mrf.mxu0
    %939 = vdwg.mxu0
    %940 = vmatpush.bf16.msra.mxu0 %v669
    %941 = vmatpush.bf16.msra.mxu0 %v666
    %942 = vmatpush.bf16.msra.mxu0 %v663
    %943 = vmatpush.bf16.msra.mxu0 %v660
    %944 = vmatpush.bf16.msra.mxu0 %v657
    %945 = vmatpush.bf16.msra.mxu0 %v654
    %946 = vmatpush.bf16.msra.mxu0 %v651
    %947 = vmatpush.bf16.msra.mxu0 %v648
    %948 = vmatmul.bf16.gmra.mxu0 %v86
    %v949 = vpop.f32.mrf.mxu0
    %v950 = vadd.f32 %v937, %v949
    %v951 = vpop.f32.mrf.mxu0
    %952 = vdwg.mxu0
    %953 = vmatpush.bf16.msra.mxu0 %v693
    %954 = vmatpush.bf16.msra.mxu0 %v690
    %955 = vmatpush.bf16.msra.mxu0 %v687
    %956 = vmatpush.bf16.msra.mxu0 %v684
    %957 = vmatpush.bf16.msra.mxu0 %v681
    %958 = vmatpush.bf16.msra.mxu0 %v678
    %959 = vmatpush.bf16.msra.mxu0 %v675
    %960 = vmatpush.bf16.msra.mxu0 %v672
    %961 = vmatmul.bf16.gmra.mxu0 %v87
    %v962 = vpop.f32.mrf.mxu0
    %v963 = vadd.f32 %v950, %v962
    %v964 = vpop.f32.mrf.mxu0
    %965 = vdwg.mxu0
    %966 = vmatpush.bf16.msra.mxu0 %v717
    %967 = vmatpush.bf16.msra.mxu0 %v714
    %968 = vmatpush.bf16.msra.mxu0 %v711
    %969 = vmatpush.bf16.msra.mxu0 %v708
    %970 = vmatpush.bf16.msra.mxu0 %v705
    %971 = vmatpush.bf16.msra.mxu0 %v702
    %972 = vmatpush.bf16.msra.mxu0 %v699
    %973 = vmatpush.bf16.msra.mxu0 %v696
    %974 = vmatmul.bf16.gmra.mxu0 %v88
    %v975 = vpop.f32.mrf.mxu0
    %v976 = vadd.f32 %v963, %v975
    %v977 = vpop.f32.mrf.mxu0
    %978 = vdwg.mxu0
    %979 = vmatpush.bf16.msra.mxu0 0
    %980 = vmatpush.bf16.msra.mxu0 0
    %981 = vmatpush.bf16.msra.mxu0 %v857
    %982 = vmatpush.bf16.msra.mxu0 %v732
    %983 = vmatpush.bf16.msra.mxu0 %v729
    %984 = vmatpush.bf16.msra.mxu0 %v726
    %985 = vmatpush.bf16.msra.mxu0 %v723
    %986 = vmatpush.bf16.msra.mxu0 %v720
    %987 = vmatmul.bf16.gmra.mxu0 %v850
    %v988 = vpop.f32.mrf.mxu0
    %v989 = vadd.f32 %v976, %v988
    %v990 = vpop.f32.mrf.mxu0
    %991 = vdwg.mxu0
    %992 = vmatpush.bf16.msra.mxu0 %v646
    %993 = vmatpush.bf16.msra.mxu0 %v643
    %994 = vmatpush.bf16.msra.mxu0 %v640
    %995 = vmatpush.bf16.msra.mxu0 %v637
    %996 = vmatpush.bf16.msra.mxu0 %v634
    %997 = vmatpush.bf16.msra.mxu0 %v631
    %998 = vmatpush.bf16.msra.mxu0 %v628
    %999 = vmatpush.bf16.msra.mxu0 %v625
    %1000 = vmatmul.bf16.gmra.mxu0 %v85
    %v1001 = vpop.f32.mrf.mxu0
    %v1002 = vadd.f32 %v244, %v1001
    %v1003 = vpop.f32.mrf.mxu0
    %1004 = vdwg.mxu0
    %1005 = vmatpush.bf16.msra.mxu0 %v670
    %1006 = vmatpush.bf16.msra.mxu0 %v667
    %1007 = vmatpush.bf16.msra.mxu0 %v664
    %1008 = vmatpush.bf16.msra.mxu0 %v661
    %1009 = vmatpush.bf16.msra.mxu0 %v658
    %1010 = vmatpush.bf16.msra.mxu0 %v655
    %1011 = vmatpush.bf16.msra.mxu0 %v652
    %1012 = vmatpush.bf16.msra.mxu0 %v649
    %1013 = vmatmul.bf16.gmra.mxu0 %v86
    %v1014 = vpop.f32.mrf.mxu0
    %v1015 = vadd.f32 %v1002, %v1014
    %v1016 = vpop.f32.mrf.mxu0
    %1017 = vdwg.mxu0
    %1018 = vmatpush.bf16.msra.mxu0 %v694
    %1019 = vmatpush.bf16.msra.mxu0 %v691
    %1020 = vmatpush.bf16.msra.mxu0 %v688
    %1021 = vmatpush.bf16.msra.mxu0 %v685
    %1022 = vmatpush.bf16.msra.mxu0 %v682
    %1023 = vmatpush.bf16.msra.mxu0 %v679
    %1024 = vmatpush.bf16.msra.mxu0 %v676
    %1025 = vmatpush.bf16.msra.mxu0 %v673
    %1026 = vmatmul.bf16.gmra.mxu0 %v87
    %v1027 = vpop.f32.mrf.mxu0
    %v1028 = vadd.f32 %v1015, %v1027
    %v1029 = vpop.f32.mrf.mxu0
    %1030 = vdwg.mxu0
    %1031 = vmatpush.bf16.msra.mxu0 %v718
    %1032 = vmatpush.bf16.msra.mxu0 %v715
    %1033 = vmatpush.bf16.msra.mxu0 %v712
    %1034 = vmatpush.bf16.msra.mxu0 %v709
    %1035 = vmatpush.bf16.msra.mxu0 %v706
    %1036 = vmatpush.bf16.msra.mxu0 %v703
    %1037 = vmatpush.bf16.msra.mxu0 %v700
    %1038 = vmatpush.bf16.msra.mxu0 %v697
    %1039 = vmatmul.bf16.gmra.mxu0 %v88
    %v1040 = vpop.f32.mrf.mxu0
    %v1041 = vadd.f32 %v1028, %v1040
    %v1042 = vpop.f32.mrf.mxu0
    %1043 = vdwg.mxu0
    %1044 = vmatpush.bf16.msra.mxu0 0
    %1045 = vmatpush.bf16.msra.mxu0 0
    %1046 = vmatpush.bf16.msra.mxu0 %v860
    %1047 = vmatpush.bf16.msra.mxu0 %v733
    %1048 = vmatpush.bf16.msra.mxu0 %v730
    %1049 = vmatpush.bf16.msra.mxu0 %v727
    %1050 = vmatpush.bf16.msra.mxu0 %v724
    %1051 = vmatpush.bf16.msra.mxu0 %v721
    %1052 = vmatmul.bf16.gmra.mxu0 %v850
    %v1053 = vpop.f32.mrf.mxu0
    %v1054 = vadd.f32 %v1041, %v1053
    %v1055 = vpop.f32.mrf.mxu0
    %1056 = vdwg.mxu0
    %v1057 = vmax.f32 %v924, 0.0
    %v1058 = vmax.f32 %v989, 0.0
    %v1059 = vmax.f32 %v1054, 0.0
    %v1060 = vpack.c.bf16 %v1057, %v1057
    %v1061 = vpack.c.bf16 %v1058, %v1058
    %v1062 = vpack.c.bf16 %v1059, %v1059
    %v1063 = vld [vmem:[#allocation4] sm:$0xf]
    %v1064 = vld [vmem:[#allocation4 + $0x4] sm:$0xf]
    %v1065 = vld [vmem:[#allocation4 + $0x8] sm:$0xf]
    %v1066 = vld [vmem:[#allocation4 + $0xc] sm:$0xf]
    %v1067 = vld [vmem:[#allocation4 + $0x10] sm:$0xf]
    %v1068 = vld [vmem:[#allocation4 + $0x14] sm:$0xf]
    %v1069 = vld [vmem:[#allocation4 + $0x18] sm:$0xf]
    %v1070 = vld [vmem:[#allocation4 + $0x1c] sm:$0xf]
    %v1071 = vld [vmem:[#allocation4 + $0x20] sm:$0xf]
    %v1072 = vld [vmem:[#allocation4 + $0x24] sm:$0xf]
    %v1073 = vld [vmem:[#allocation4 + $0x28] sm:$0xf]
    %v1074 = vld [vmem:[#allocation4 + $0x2c] sm:$0xf]
    %v1075 = vld [vmem:[#allocation4 + $0x30] sm:$0xf]
    %v1076 = vld [vmem:[#allocation4 + $0x34] sm:$0xf]
    %v1077 = vld [vmem:[#allocation4 + $0x38] sm:$0xf]
    %v1078 = vld [vmem:[#allocation4 + $0x3c] sm:$0xf]
    %v1079 = vld [vmem:[#allocation4 + $0x40] sm:$0xf]
    %v1080 = vld [vmem:[#allocation4 + $0x44] sm:$0xf]
    %v1081 = vld [vmem:[#allocation4 + $0x48] sm:$0xf]
    %v1082 = vld [vmem:[#allocation4 + $0x4c] sm:$0xf]
    %v1083 = vld [vmem:[#allocation4 + $0x50] sm:$0xf]
    %v1084 = vld [vmem:[#allocation4 + $0x54] sm:$0xf]
    %v1085 = vld [vmem:[#allocation4 + $0x58] sm:$0xf]
    %v1086 = vld [vmem:[#allocation4 + $0x5c] sm:$0xf]
    %v1087 = vld [vmem:[#allocation4 + $0x60] sm:$0xf]
    %v1088 = vld [vmem:[#allocation4 + $0x64] sm:$0xf]
    %v1089 = vld [vmem:[#allocation4 + $0x68] sm:$0xf]
    %v1090 = vld [vmem:[#allocation4 + $0x6c] sm:$0xf]
    %v1091 = vld [vmem:[#allocation4 + $0x70] sm:$0xf]
    %v1092 = vld [vmem:[#allocation4 + $0x74] sm:$0xf]
    %v1093 = vld [vmem:[#allocation4 + $0x78] sm:$0xf]
    %v1094 = vld [vmem:[#allocation4 + $0x7c] sm:$0xf]
    %v1095 = vld [vmem:[#allocation4 + $0x80] sm:$0xf]
    %v1096 = vld [vmem:[#allocation4 + $0x84] sm:$0xf]
    %v1097 = vld [vmem:[#allocation4 + $0x88] sm:$0xf]
    %v1098 = vld [vmem:[#allocation4 + $0x8c] sm:$0xf]
    %v1099 = vld [vmem:[#allocation4 + $0x90] sm:$0xf]
    %v1100 = vld [vmem:[#allocation4 + $0x94] sm:$0xf]
    %v1101 = vld [vmem:[#allocation4 + $0x98] sm:$0xf]
    %v1102 = vld [vmem:[#allocation4 + $0x9c] sm:$0xf]
    %v1103 = vld [vmem:[#allocation4 + $0xa0] sm:$0xf]
    %v1104 = vld [vmem:[#allocation4 + $0xa4] sm:$0xf]
    %v1105 = vld [vmem:[#allocation4 + $0xa8] sm:$0xf]
    %v1106 = vld [vmem:[#allocation4 + $0xac] sm:$0xf]
    %v1107 = vld [vmem:[#allocation4 + $0xb0] sm:$0xf]
    %v1108 = vld [vmem:[#allocation4 + $0xb4] sm:$0xf]
    %v1109 = vld [vmem:[#allocation4 + $0xb8] sm:$0xf]
    %v1110 = vld [vmem:[#allocation4 + $0xbc] sm:$0xf]
    %v1111 = vld [vmem:[%s4] sm:$0x1]
    %v1113 = vperm.slane %v1111, 0
    %v1163 = vunpack.c.l.b16 %v1063
    %v1164 = vunpack.c.l.b16 %v1064
    %v1165 = vunpack.c.l.b16 %v1065
    %v1166 = vunpack.c.l.b16 %v1066
    %v1167 = vunpack.c.l.b16 %v1067
    %v1168 = vunpack.c.l.b16 %v1068
    %v1169 = vunpack.c.l.b16 %v1069
    %v1170 = vunpack.c.l.b16 %v1070
    %v1171 = vunpack.c.l.b16 %v1071
    %v1172 = vunpack.c.l.b16 %v1072
    %v1173 = vunpack.c.l.b16 %v1073
    %v1174 = vunpack.c.l.b16 %v1074
    %v1175 = vunpack.c.l.b16 %v1075
    %v1176 = vunpack.c.l.b16 %v1076
    %v1177 = vunpack.c.l.b16 %v1077
    %v1178 = vunpack.c.l.b16 %v1078
    %v1179 = vunpack.c.l.b16 %v1079
    %v1180 = vunpack.c.l.b16 %v1080
    %v1181 = vunpack.c.l.b16 %v1081
    %v1182 = vunpack.c.l.b16 %v1082
    %v1183 = vunpack.c.l.b16 %v1083
    %v1184 = vunpack.c.l.b16 %v1084
    %v1185 = vunpack.c.l.b16 %v1085
    %v1186 = vunpack.c.l.b16 %v1086
    %v1187 = vunpack.c.l.b16 %v1087
    %v1188 = vunpack.c.l.b16 %v1088
    %v1189 = vunpack.c.l.b16 %v1089
    %v1190 = vunpack.c.l.b16 %v1090
    %v1191 = vunpack.c.l.b16 %v1091
    %v1192 = vunpack.c.l.b16 %v1092
    %v1193 = vunpack.c.l.b16 %v1093
    %v1194 = vunpack.c.l.b16 %v1094
    %v1195 = vunpack.c.l.b16 %v1095
    %v1196 = vunpack.c.l.b16 %v1096
    %v1197 = vunpack.c.l.b16 %v1097
    %v1198 = vunpack.c.l.b16 %v1098
    %v1199 = vunpack.c.l.b16 %v1099
    %v1200 = vunpack.c.l.b16 %v1100
    %v1201 = vunpack.c.l.b16 %v1101
    %v1202 = vunpack.c.l.b16 %v1102
    %v1203 = vunpack.c.l.b16 %v1103
    %v1204 = vunpack.c.l.b16 %v1104
    %v1205 = vunpack.c.l.b16 %v1105
    %v1206 = vunpack.c.l.b16 %v1106
    %v1207 = vunpack.c.l.b16 %v1107
    %v1208 = vunpack.c.l.b16 %v1108
    %v1209 = vunpack.c.l.b16 %v1109
    %v1210 = vunpack.c.l.b16 %v1110
    %v1211 = vpack.c.b16 %v1164, %v1163
    %v1212 = vpack.c.b16 %v1166, %v1165
    %v1213 = vpack.c.b16 %v1168, %v1167
    %v1214 = vpack.c.b16 %v1170, %v1169
    %v1215 = vpack.c.b16 %v1172, %v1171
    %v1216 = vpack.c.b16 %v1174, %v1173
    %v1217 = vpack.c.b16 %v1176, %v1175
    %v1218 = vpack.c.b16 %v1178, %v1177
    %v1219 = vpack.c.b16 %v1180, %v1179
    %v1220 = vpack.c.b16 %v1182, %v1181
    %v1221 = vpack.c.b16 %v1184, %v1183
    %v1222 = vpack.c.b16 %v1186, %v1185
    %v1223 = vpack.c.b16 %v1188, %v1187
    %v1224 = vpack.c.b16 %v1190, %v1189
    %v1225 = vpack.c.b16 %v1192, %v1191
    %v1226 = vpack.c.b16 %v1194, %v1193
    %v1227 = vpack.c.b16 %v1196, %v1195
    %v1228 = vpack.c.b16 %v1198, %v1197
    %v1229 = vpack.c.b16 %v1200, %v1199
    %v1230 = vpack.c.b16 %v1202, %v1201
    %v1231 = vpack.c.b16 %v1204, %v1203
    %v1232 = vpack.c.b16 %v1206, %v1205
    %v1233 = vpack.c.b16 %v1208, %v1207
    %v1234 = vpack.c.b16 %v1210, %v1209
    %1259 = vmatpush.bf16.msra.mxu0 %v1218
    %1260 = vmatpush.bf16.msra.mxu0 %v1217
    %1261 = vmatpush.bf16.msra.mxu0 %v1216
    %1262 = vmatpush.bf16.msra.mxu0 %v1215
    %1263 = vmatpush.bf16.msra.mxu0 %v1214
    %1264 = vmatpush.bf16.msra.mxu0 %v1213
    %1265 = vmatpush.bf16.msra.mxu0 %v1212
    %1266 = vmatpush.bf16.msra.mxu0 %v1211
    %1267 = vmatmul.bf16.gmra.mxu0 %v1060
    %v1268 = vpop.f32.mrf.mxu0
    %v1269 = vadd.f32 %v1113, %v1268
    %v1270 = vpop.f32.mrf.mxu0
    %1271 = vdwg.mxu0
    %1272 = vmatpush.bf16.msra.mxu0 %v1226
    %1273 = vmatpush.bf16.msra.mxu0 %v1225
    %1274 = vmatpush.bf16.msra.mxu0 %v1224
    %1275 = vmatpush.bf16.msra.mxu0 %v1223
    %1276 = vmatpush.bf16.msra.mxu0 %v1222
    %1277 = vmatpush.bf16.msra.mxu0 %v1221
    %1278 = vmatpush.bf16.msra.mxu0 %v1220
    %1279 = vmatpush.bf16.msra.mxu0 %v1219
    %1280 = vmatmul.bf16.gmra.mxu0 %v1061
    %v1281 = vpop.f32.mrf.mxu0
    %v1282 = vadd.f32 %v1269, %v1281
    %v1283 = vpop.f32.mrf.mxu0
    %1284 = vdwg.mxu0
    %1285 = vmatpush.bf16.msra.mxu0 %v1234
    %1286 = vmatpush.bf16.msra.mxu0 %v1233
    %1287 = vmatpush.bf16.msra.mxu0 %v1232
    %1288 = vmatpush.bf16.msra.mxu0 %v1231
    %1289 = vmatpush.bf16.msra.mxu0 %v1230
    %1290 = vmatpush.bf16.msra.mxu0 %v1229
    %1291 = vmatpush.bf16.msra.mxu0 %v1228
    %1292 = vmatpush.bf16.msra.mxu0 %v1227
    %1293 = vmatmul.bf16.gmra.mxu0 %v1062
    %v1294 = vpop.f32.mrf.mxu0
    %v1295 = vadd.f32 %v1282, %v1294
    %v1296 = vpop.f32.mrf.mxu0
    %1297 = vdwg.mxu0
    %v1298 = vmax.f32 %v1295, 0.0
    %v1299 = vpack.c.bf16 %v1298, %v1298
    %v1300 = vld [vmem:[%s5] sm:$0xf]
    %v1301 = vld [vmem:[%s5 + $0x4] sm:$0xf]
    %v1302 = vld [vmem:[%s5 + $0x8] sm:$0xf]
    %v1303 = vld [vmem:[%s5 + $0xc] sm:$0xf]
    %v1304 = vld [vmem:[%s5 + $0x10] sm:$0xf]
    %v1305 = vld [vmem:[%s5 + $0x14] sm:$0xf]
    %v1306 = vld [vmem:[%s5 + $0x18] sm:$0xf]
    %v1307 = vld [vmem:[%s5 + $0x1c] sm:$0xf]
    %v1308 = vld [vmem:[%s5 + $0x20] sm:$0xf]
    %v1309 = vld [vmem:[%s5 + $0x24] sm:$0xf]
    %v1310 = vld [vmem:[%s5 + $0x28] sm:$0xf]
    %v1311 = vld [vmem:[%s5 + $0x2c] sm:$0xf]
    %v1312 = vld [vmem:[%s5 + $0x30] sm:$0xf]
    %v1313 = vld [vmem:[%s5 + $0x34] sm:$0xf]
    %v1314 = vld [vmem:[%s5 + $0x38] sm:$0xf]
    %v1315 = vld [vmem:[%s5 + $0x3c] sm:$0xf]
    %v1316 = vld [vmem:[%s6] sm:$0x1]
    %v1318 = vperm.slane %v1316, 0
    %v1336 = vunpack.c.l.b16 %v1300
    %v1337 = vunpack.c.l.b16 %v1301
    %v1338 = vunpack.c.l.b16 %v1302
    %v1339 = vunpack.c.l.b16 %v1303
    %v1340 = vunpack.c.l.b16 %v1304
    %v1341 = vunpack.c.l.b16 %v1305
    %v1342 = vunpack.c.l.b16 %v1306
    %v1343 = vunpack.c.l.b16 %v1307
    %v1344 = vunpack.c.l.b16 %v1308
    %v1345 = vunpack.c.l.b16 %v1309
    %v1346 = vunpack.c.l.b16 %v1310
    %v1347 = vunpack.c.l.b16 %v1311
    %v1348 = vunpack.c.l.b16 %v1312
    %v1349 = vunpack.c.l.b16 %v1313
    %v1350 = vunpack.c.l.b16 %v1314
    %v1351 = vunpack.c.l.b16 %v1315
    %v1352 = vpack.c.b16 %v1337, %v1336
    %v1353 = vpack.c.b16 %v1339, %v1338
    %v1354 = vpack.c.b16 %v1341, %v1340
    %v1355 = vpack.c.b16 %v1343, %v1342
    %v1356 = vpack.c.b16 %v1345, %v1344
    %v1357 = vpack.c.b16 %v1347, %v1346
    %v1358 = vpack.c.b16 %v1349, %v1348
    %v1359 = vpack.c.b16 %v1351, %v1350
    %1368 = vmatpush.bf16.msra.mxu0 %v1359
    %1369 = vmatpush.bf16.msra.mxu0 %v1358
    %1370 = vmatpush.bf16.msra.mxu0 %v1357
    %1371 = vmatpush.bf16.msra.mxu0 %v1356
    %1372 = vmatpush.bf16.msra.mxu0 %v1355
    %1373 = vmatpush.bf16.msra.mxu0 %v1354
    %1374 = vmatpush.bf16.msra.mxu0 %v1353
    %1375 = vmatpush.bf16.msra.mxu0 %v1352
    %1376 = vmatmul.bf16.gmra.mxu0 %v1299
    %v1377 = vpop.f32.mrf.mxu0
    %v1378 = vadd.f32 %v1318, %v1377
    %v1379 = vpop.f32.mrf.mxu0
    %1380 = vdwg.mxu0
    %v1381 = vmax.f32 %v1378, 0.0
    %v1382 = vpack.c.bf16 %v1381, %v1381
    %v1383 = vld [vmem:[#allocation6] sm:$0xf]
    %v1384 = vld [vmem:[#allocation6 + $0x4] sm:$0xf]
    %v1385 = vld [vmem:[#allocation6 + $0x8] sm:$0xf]
    %v1386 = vld [vmem:[#allocation6 + $0xc] sm:$0xf]
    %v1387 = vld [vmem:[#allocation6 + $0x10] sm:$0xf]
    %v1388 = vld [vmem:[#allocation6 + $0x14] sm:$0xf]
    %v1389 = vld [vmem:[#allocation6 + $0x18] sm:$0xf]
    %v1390 = vld [vmem:[#allocation6 + $0x1c] sm:$0xf]
    %v1391 = vld [vmem:[#allocation6 + $0x20] sm:$0xf]
    %v1392 = vld [vmem:[#allocation6 + $0x24] sm:$0xf]
    %v1393 = vld [vmem:[#allocation6 + $0x28] sm:$0xf]
    %v1394 = vld [vmem:[#allocation6 + $0x2c] sm:$0xf]
    %v1395 = vld [vmem:[#allocation6 + $0x30] sm:$0xf]
    %v1396 = vld [vmem:[#allocation6 + $0x34] sm:$0xf]
    %v1397 = vld [vmem:[#allocation6 + $0x38] sm:$0xf]
    %v1398 = vld [vmem:[#allocation6 + $0x3c] sm:$0xf]
    %v1399 = vld [vmem:[%s8] sm:$0x1]
    %v1401 = vperm.slane %v1399, 0
    %v1419 = vunpack.c.l.b16 %v1383
    %v1420 = vunpack.c.l.b16 %v1384
    %v1421 = vunpack.c.l.b16 %v1385
    %v1422 = vunpack.c.l.b16 %v1386
    %v1423 = vunpack.c.l.b16 %v1387
    %v1424 = vunpack.c.l.b16 %v1388
    %v1425 = vunpack.c.l.b16 %v1389
    %v1426 = vunpack.c.l.b16 %v1390
    %v1427 = vunpack.c.l.b16 %v1391
    %v1428 = vunpack.c.l.b16 %v1392
    %v1429 = vunpack.c.l.b16 %v1393
    %v1430 = vunpack.c.l.b16 %v1394
    %v1431 = vunpack.c.l.b16 %v1395
    %v1432 = vunpack.c.l.b16 %v1396
    %v1433 = vunpack.c.l.b16 %v1397
    %v1434 = vunpack.c.l.b16 %v1398
    %v1435 = vpack.c.b16 %v1420, %v1419
    %v1436 = vpack.c.b16 %v1422, %v1421
    %v1437 = vpack.c.b16 %v1424, %v1423
    %v1438 = vpack.c.b16 %v1426, %v1425
    %v1439 = vpack.c.b16 %v1428, %v1427
    %v1440 = vpack.c.b16 %v1430, %v1429
    %v1441 = vpack.c.b16 %v1432, %v1431
    %v1442 = vpack.c.b16 %v1434, %v1433
    %1451 = vmatpush.bf16.msra.mxu0 %v1442
    %1452 = vmatpush.bf16.msra.mxu0 %v1441
    %1453 = vmatpush.bf16.msra.mxu0 %v1440
    %1454 = vmatpush.bf16.msra.mxu0 %v1439
    %1455 = vmatpush.bf16.msra.mxu0 %v1438
    %1456 = vmatpush.bf16.msra.mxu0 %v1437
    %1457 = vmatpush.bf16.msra.mxu0 %v1436
    %1458 = vmatpush.bf16.msra.mxu0 %v1435
    %1459 = vmatmul.bf16.gmra.mxu0 %v1382
    %v1460 = vpop.f32.mrf.mxu0
    %v1461 = vadd.f32 %v1401, %v1460
    %v1462 = vpop.f32.mrf.mxu0
    %1463 = vdwg.mxu0
    %v1464 = vpack.c.bf16 %v1461, %v1461
    %1465 = vst [vmem:[%s9] sm:$0xf] %v1464
    // Predicated region
    $region50: #{neural_net_forward.1} parent=1 // pred_check
      _
    $region51: #{neural_net_forward.1} parent=1 // pred_check_branch
      %1467 = sbr.rel (0) target = $region53
    $region52: #{neural_net_forward.1} parent=1 // pred_region
      _
    $region53: #{neural_net_forward.1} parent=1 // pred_fallthru
      _
    // Predicated region
    $region54: #{neural_net_forward.1} parent=1 // pred_check
      _
    $region55: #{neural_net_forward.1} parent=1 // pred_check_branch
      %1469 = sbr.rel (0) target = $region57
    $region56: #{neural_net_forward.1} parent=1 // pred_region
      _
    $region57: #{neural_net_forward.1} parent=1 // pred_fallthru
      _
    %1470 = vsyncpa [#allocation3], 1
    %1471 = vsyncpa [#allocation5], 1

</llo_original>
